<compile_context>
chip_gen: v7x
topology: tpu7x:2x2x1
jax: 0.10.0
libtpu: 0.0.40
codegen_flags: <defaults>
</compile_context>

<pallas_src>
import jax
import jax.numpy as jnp
from jax.experimental import pallas as pl
from jax.experimental.pallas import tpu as pltpu

_SELU_ALPHA = 1.6732632423543772
_SELU_SCALE = 1.0507009873554805

# ~2 MiB of input per grid step: big enough to amortize the ~0.35 us per-step
# overhead (>=1 MiB hits 85%+ of HBM roofline), small enough that 2x(in+out)
# double buffers + f32 temporaries stay inside every generation's VMEM.
_BLOCK_BYTES = 2 * 1024 * 1024
_VMEM_LIMIT = 32 * 1024 * 1024      # explicit: > v5e's 16 MiB scoped default,
                                    # == v7x's scoped default (64 MiB physical)


def _round_up(v, m):
    return -(-v // m) * m


def _selu(x):
    # exp argument clamped so the discarded branch cannot overflow.
    return _SELU_SCALE * jnp.where(
        x > 0, x, _SELU_ALPHA * (jnp.exp(jnp.minimum(x, 0)) - 1.0))


# ---------------------------------------------------------------------------
# Small-C path: spatial dense on sublanes AND lanes, 1x1 conv on the VPU.
# ---------------------------------------------------------------------------
def _su2_dense_kernel(w_ref, x_ref, o_ref):
    # w_ref: (C_out, C_in) f32 in SMEM (read as scalars)
    # x_ref: (nb, C_in, rows, 128)  -- every (rows,128) slab is a dense vreg tile
    # o_ref: (nb, C_out, rows, 128)
    c_out, c_in = w_ref.shape
    x = x_ref[...]
    ew = x.dtype if x.dtype == jnp.bfloat16 else jnp.float32
    xs = x.astype(ew)                          # bf16 stays bf16 on the VPU/EUP
    s = _selu(xs).astype(jnp.float32)          # accumulate the 1x1 conv in f32
    for o in range(c_out):
        g = w_ref[o, 0] * s[:, 0]
        for c in range(1, c_in):
            g = g + w_ref[o, c] * s[:, c]
        gate = 0.5 * jnp.tanh(0.5 * g) + 0.5   # sigmoid: a single EUP transcendental
        o_ref[:, o] = (xs[:, o] * gate.astype(ew)).astype(o_ref.dtype)


def _plan_dense(N, C_in, R, itemsize, block_bytes):
    """Pick (nb, rb): batch items per block and 128-lane spatial rows per block."""
    row_bytes = C_in * 128 * itemsize
    rb_cap = max(8, (block_bytes // row_bytes) // 8 * 8)
    if R > rb_cap:
        return 1, rb_cap                        # >= 2 row tiles; ragged tail is masked
    rb, nb = R, 1
    if N > 1:
        item_bytes = row_bytes * R
        nb_cap = max(1, block_bytes // item_bytes)
        for d in range(1, N + 1):               # largest divisor of N that fits the
            if N % d == 0 and d <= nb_cap and N // d >= 2:
                nb = d                          # budget and keeps >= 2 grid steps
    elif R >= 16:                               # N == 1: force a 2-way spatial split
        rb = min(R, _round_up(_round_up(R, 2) // 2, 8))   # (v7x: 2 TensorCores)
    return nb, rb


# ---------------------------------------------------------------------------
# General path: channel-major (C, TS) tiles, 1x1 conv as an MXU matmul.
# ---------------------------------------------------------------------------
def _su2_flat_kernel(w_ref, x_ref, o_ref):
    # w_ref: (C_out, C_in) f32 in VMEM; x_ref: (C_in, ts); o_ref: (C_out, ts)
    x = x_ref[...]
    ew = x.dtype if x.dtype == jnp.bfloat16 else jnp.float32
    xs = x.astype(ew)
    s = _selu(xs)
    g = jnp.dot(w_ref[...], s.astype(jnp.float32),
                preferred_element_type=jnp.float32)
    gate = 0.5 * jnp.tanh(0.5 * g) + 0.5
    o_ref[...] = (xs * gate.astype(ew)).astype(o_ref.dtype)


def _plan_flat(N, C_in, S, itemsize, block_bytes):
    """Pick ts: spatial elements per block (multiple of 128, or the full S)."""
    ts_cap = max(128, (block_bytes // (C_in * itemsize)) // 128 * 128)
    if S > ts_cap:
        return ts_cap                           # >= 2 tiles; ragged tail is masked
    if N == 1 and S >= 256:                     # keep >= 2 grid steps (v7x: 2 TCs)
        return _round_up(_round_up(S, 2) // 2, 128)
    return S


# ---------------------------------------------------------------------------
# Wrapper
# ---------------------------------------------------------------------------
def selection_unit2(x_nchw, weight, *, block_bytes=_BLOCK_BYTES):
    """x_nchw: (N, C_in, H, W); weight: (C_out, C_in) or (C_out, C_in, 1, 1)
    from nn.Conv2d(kernel_size=1, bias=False)."""
    if weight.ndim == 4:
        weight = weight[:, :, 0, 0]
    N, C_in, H, W = x_nchw.shape
    C_out = weight.shape[0]
    assert weight.shape == (C_out, C_in)
    assert C_out == C_in, "x * net(x) requires c_out == c_in"

    S = H * W
    itemsize = jnp.dtype(x_nchw.dtype).itemsize
    w32 = weight.astype(jnp.float32)
    cparams = pltpu.CompilerParams(
        dimension_semantics=("parallel", "parallel"),
        vmem_limit_bytes=_VMEM_LIMIT)

    dense_c_max = 16 if itemsize < 4 else 8     # channels that fill one packed sublane group
    if S % 128 == 0 and C_in < dense_c_max:
        # Small-C: C on sublanes would leave vregs 50-75% padding, so put spatial
        # on both sublanes and lanes; weight lives in SMEM, contraction on the VPU.
        R = S // 128
        x_r = x_nchw.reshape(N, C_in, R, 128)   # free reshape: NCHW is channel-major
        nb, rb = _plan_dense(N, C_in, R, itemsize, block_bytes)
        out = pl.pallas_call(
            _su2_dense_kernel,
            out_shape=jax.ShapeDtypeStruct((N, C_out, R, 128), x_nchw.dtype),
            grid_spec=pltpu.PrefetchScalarGridSpec(
                num_scalar_prefetch=0,
                grid=(N // nb, pl.cdiv(R, rb)),
                in_specs=[
                    pl.BlockSpec(memory_space=pltpu.MemorySpace.SMEM),   # weight
                    pl.BlockSpec((nb, C_in, rb, 128), lambda b, t: (b, 0, t, 0)),
                ],
                out_specs=pl.BlockSpec((nb, C_out, rb, 128),
                                       lambda b, t: (b, 0, t, 0)),
            ),
            compiler_params=cparams,
        )(w32, x_r)
        return out.reshape(N, C_out, H, W)

    # General path (large C, or S not a multiple of 128). Ragged S is handled by
    # the boundary block: partial reads + masked stores, no HBM pad / slice pass.
    x_f = x_nchw.reshape(N, C_in, S)             # free reshape
    ts = _plan_flat(N, C_in, S, itemsize, block_bytes)
    out = pl.pallas_call(
        _su2_flat_kernel,
        out_shape=jax.ShapeDtypeStruct((N, C_out, S), x_nchw.dtype),
        grid_spec=pltpu.PrefetchScalarGridSpec(
            num_scalar_prefetch=0,
            grid=(N, pl.cdiv(S, ts)),
            in_specs=[
                pl.BlockSpec((C_out, C_in), lambda n, t: (0, 0)),        # weight
                pl.BlockSpec((None, C_in, ts), lambda n, t: (n, 0, t)),
            ],
            out_specs=pl.BlockSpec((None, C_out, ts), lambda n, t: (n, 0, t)),
        ),
        compiler_params=cparams,
    )(w32, x_f)
    return out.reshape(N, C_out, H, W)


# ---------------------------------------------------------------------------
# Pure-JAX reference (matches the PyTorch forward) and self-test
# ---------------------------------------------------------------------------
def _reference(x_nchw, weight_oi):
    x = x_nchw.astype(jnp.float32)
    w = weight_oi.astype(jnp.float32)
    s = _SELU_SCALE * jnp.where(
        x > 0, x, _SELU_ALPHA * (jnp.exp(jnp.minimum(x, 0.0)) - 1.0))
    g = jnp.einsum("nchw,oc->nohw", s, w)
    return x * jax.nn.sigmoid(g)


if __name__ == "__main__":
    key = jax.random.PRNGKey(0)
    k_x1, k_x2, k_w = jax.random.split(key, 3)

    # Primary config (small-C dense/VPU path): batch=2, channels=4, 16x16 spatial.
    N, C, H, W = 2, 4, 16, 16
    x1 = jax.random.normal(k_x1, (N, C, H, W), dtype=jnp.float32)
    w = jax.random.normal(k_w, (C, C), dtype=jnp.float32) * 0.1

    out1 = jax.block_until_ready(selection_unit2(x1, w))
    ref1 = _reference(x1, w)
    assert out1.shape == x1.shape
    assert jnp.allclose(out1, ref1, atol=1e-5, rtol=1e-5), "dense path mismatch"

    # Ragged-spatial config (flat/MXU path): S = 18*18 = 324 is not a multiple
    # of 128 -> masked boundary tile, no HBM padding; N == 1 forces a 2-step grid.
    x2 = jax.random.normal(k_x2, (1, C, 18, 18), dtype=jnp.float32)
    out2 = jax.block_until_ready(selection_unit2(x2, w))
    ref2 = _reference(x2, w)
    assert out2.shape == x2.shape
    assert jnp.allclose(out2, ref2, atol=1e-5, rtol=1e-5), "flat path mismatch"

    print("KERNEL_OK")
</pallas_src>

<mosaic_0001>
module attributes {stable_mosaic.version = 11 : i64} {
  func.func @_su2_dense_kernel(%arg0: i32, %arg1: i32, %arg2: memref<4x4xf32, #tpu.memory_space<smem>>, %arg3: memref<1x4x2x128xf32, #tpu.memory_space<vmem>>, %arg4: memref<1x4x2x128xf32, #tpu.memory_space<vmem>>) attributes {dimension_semantics = [#tpu.dimension_semantics<parallel>, #tpu.dimension_semantics<parallel>], iteration_bounds = array<i64: 2, 1>, scalar_prefetch = 0 : i64, scratch_operands = 0 : i64, tpu.core_type = #tpu.core_type<tc>, window_params = [{transform_indices = @transform_0, window_bounds = array<i64: 4, 4>}, {transform_indices = @transform_1, window_bounds = array<i64: 1, 4, 2, 128>}, {transform_indices = @transform_2, window_bounds = array<i64: 1, 4, 2, 128>}]} {
    %c0 = arith.constant 0 : index
    %c0_0 = arith.constant 0 : index
    %c0_1 = arith.constant 0 : index
    %c0_2 = arith.constant 0 : index
    %0 = vector.load %arg3[%c0, %c0_0, %c0_1, %c0_2] : memref<1x4x2x128xf32, #tpu.memory_space<vmem>>, vector<1x4x2x128xf32>
    %cst = arith.constant 0.000000e+00 : f32
    %1 = vector.broadcast %cst : f32 to vector<1x4x2x128xf32>
    %2 = arith.cmpf ogt, %0, %1 : vector<1x4x2x128xf32>
    %cst_3 = arith.constant 0.000000e+00 : f32
    %3 = vector.broadcast %cst_3 : f32 to vector<1x4x2x128xf32>
    %4 = arith.minimumf %0, %3 : vector<1x4x2x128xf32>
    %5 = math.exp %4 : vector<1x4x2x128xf32>
    %cst_4 = arith.constant 1.000000e+00 : f32
    %6 = vector.broadcast %cst_4 : f32 to vector<1x4x2x128xf32>
    %7 = arith.subf %5, %6 : vector<1x4x2x128xf32>
    %cst_5 = arith.constant 1.67326319 : f32
    %8 = vector.broadcast %cst_5 : f32 to vector<1x4x2x128xf32>
    %9 = arith.mulf %8, %7 : vector<1x4x2x128xf32>
    %10 = arith.select %2, %0, %9 : vector<1x4x2x128xi1>, vector<1x4x2x128xf32>
    %cst_6 = arith.constant 1.05070102 : f32
    %11 = vector.broadcast %cst_6 : f32 to vector<1x4x2x128xf32>
    %12 = arith.mulf %11, %10 : vector<1x4x2x128xf32>
    %c0_7 = arith.constant 0 : index
    %c0_8 = arith.constant 0 : index
    %13 = memref.load %arg2[%c0_7, %c0_8] : memref<4x4xf32, #tpu.memory_space<smem>>
    %14 = vector.extract_strided_slice %12 {offsets = [0, 0, 0, 0], sizes = [1, 1, 2, 128], strides = [1, 1, 1, 1]} : vector<1x4x2x128xf32> to vector<1x1x2x128xf32>
    %15 = vector.shape_cast %14 : vector<1x1x2x128xf32> to vector<1x2x128xf32>
    %16 = vector.broadcast %13 : f32 to vector<1x2x128xf32>
    %17 = arith.mulf %16, %15 : vector<1x2x128xf32>
    %c0_9 = arith.constant 0 : index
    %c1 = arith.constant 1 : index
    %18 = memref.load %arg2[%c0_9, %c1] : memref<4x4xf32, #tpu.memory_space<smem>>
    %19 = vector.extract_strided_slice %12 {offsets = [0, 1, 0, 0], sizes = [1, 1, 2, 128], strides = [1, 1, 1, 1]} : vector<1x4x2x128xf32> to vector<1x1x2x128xf32>
    %20 = vector.shape_cast %19 : vector<1x1x2x128xf32> to vector<1x2x128xf32>
    %21 = vector.broadcast %18 : f32 to vector<1x2x128xf32>
    %22 = arith.mulf %21, %20 : vector<1x2x128xf32>
    %23 = arith.addf %17, %22 : vector<1x2x128xf32>
    %c0_10 = arith.constant 0 : index
    %c2 = arith.constant 2 : index
    %24 = memref.load %arg2[%c0_10, %c2] : memref<4x4xf32, #tpu.memory_space<smem>>
    %25 = vector.extract_strided_slice %12 {offsets = [0, 2, 0, 0], sizes = [1, 1, 2, 128], strides = [1, 1, 1, 1]} : vector<1x4x2x128xf32> to vector<1x1x2x128xf32>
    %26 = vector.shape_cast %25 : vector<1x1x2x128xf32> to vector<1x2x128xf32>
    %27 = vector.broadcast %24 : f32 to vector<1x2x128xf32>
    %28 = arith.mulf %27, %26 : vector<1x2x128xf32>
    %29 = arith.addf %23, %28 : vector<1x2x128xf32>
    %c0_11 = arith.constant 0 : index
    %c3 = arith.constant 3 : index
    %30 = memref.load %arg2[%c0_11, %c3] : memref<4x4xf32, #tpu.memory_space<smem>>
    %31 = vector.extract_strided_slice %12 {offsets = [0, 3, 0, 0], sizes = [1, 1, 2, 128], strides = [1, 1, 1, 1]} : vector<1x4x2x128xf32> to vector<1x1x2x128xf32>
    %32 = vector.shape_cast %31 : vector<1x1x2x128xf32> to vector<1x2x128xf32>
    %33 = vector.broadcast %30 : f32 to vector<1x2x128xf32>
    %34 = arith.mulf %33, %32 : vector<1x2x128xf32>
    %35 = arith.addf %29, %34 : vector<1x2x128xf32>
    %cst_12 = arith.constant 5.000000e-01 : f32
    %36 = vector.broadcast %cst_12 : f32 to vector<1x2x128xf32>
    %37 = arith.mulf %36, %35 : vector<1x2x128xf32>
    %38 = math.tanh %37 : vector<1x2x128xf32>
    %cst_13 = arith.constant 5.000000e-01 : f32
    %39 = vector.broadcast %cst_13 : f32 to vector<1x2x128xf32>
    %40 = arith.mulf %39, %38 : vector<1x2x128xf32>
    %cst_14 = arith.constant 5.000000e-01 : f32
    %41 = vector.broadcast %cst_14 : f32 to vector<1x2x128xf32>
    %42 = arith.addf %40, %41 : vector<1x2x128xf32>
    %43 = vector.extract_strided_slice %0 {offsets = [0, 0, 0, 0], sizes = [1, 1, 2, 128], strides = [1, 1, 1, 1]} : vector<1x4x2x128xf32> to vector<1x1x2x128xf32>
    %44 = vector.shape_cast %43 : vector<1x1x2x128xf32> to vector<1x2x128xf32>
    %45 = arith.mulf %44, %42 : vector<1x2x128xf32>
    %c0_15 = arith.constant 0 : index
    %c0_16 = arith.constant 0 : index
    %c0_17 = arith.constant 0 : index
    %c0_18 = arith.constant 0 : index
    %46 = vector.load %arg4[%c0_15, %c0_16, %c0_17, %c0_18] : memref<1x4x2x128xf32, #tpu.memory_space<vmem>>, vector<1x1x2x128xf32>
    %47 = vector.shape_cast %46 : vector<1x1x2x128xf32> to vector<1x2x128xf32>
    %48 = vector.shape_cast %45 : vector<1x2x128xf32> to vector<1x1x2x128xf32>
    tpu.vector_store %arg4[%c0_15, %c0_16, %c0_17, %c0_18], %48 {strides = array<i32>} : memref<1x4x2x128xf32, #tpu.memory_space<vmem>>, vector<1x1x2x128xf32>,
    %c1_19 = arith.constant 1 : index
    %c0_20 = arith.constant 0 : index
    %49 = memref.load %arg2[%c1_19, %c0_20] : memref<4x4xf32, #tpu.memory_space<smem>>
    %50 = vector.extract_strided_slice %12 {offsets = [0, 0, 0, 0], sizes = [1, 1, 2, 128], strides = [1, 1, 1, 1]} : vector<1x4x2x128xf32> to vector<1x1x2x128xf32>
    %51 = vector.shape_cast %50 : vector<1x1x2x128xf32> to vector<1x2x128xf32>
    %52 = vector.broadcast %49 : f32 to vector<1x2x128xf32>
    %53 = arith.mulf %52, %51 : vector<1x2x128xf32>
    %c1_21 = arith.constant 1 : index
    %c1_22 = arith.constant 1 : index
    %54 = memref.load %arg2[%c1_21, %c1_22] : memref<4x4xf32, #tpu.memory_space<smem>>
    %55 = vector.extract_strided_slice %12 {offsets = [0, 1, 0, 0], sizes = [1, 1, 2, 128], strides = [1, 1, 1, 1]} : vector<1x4x2x128xf32> to vector<1x1x2x128xf32>
    %56 = vector.shape_cast %55 : vector<1x1x2x128xf32> to vector<1x2x128xf32>
    %57 = vector.broadcast %54 : f32 to vector<1x2x128xf32>
    %58 = arith.mulf %57, %56 : vector<1x2x128xf32>
    %59 = arith.addf %53, %58 : vector<1x2x128xf32>
    %c1_23 = arith.constant 1 : index
    %c2_24 = arith.constant 2 : index
    %60 = memref.load %arg2[%c1_23, %c2_24] : memref<4x4xf32, #tpu.memory_space<smem>>
    %61 = vector.extract_strided_slice %12 {offsets = [0, 2, 0, 0], sizes = [1, 1, 2, 128], strides = [1, 1, 1, 1]} : vector<1x4x2x128xf32> to vector<1x1x2x128xf32>
    %62 = vector.shape_cast %61 : vector<1x1x2x128xf32> to vector<1x2x128xf32>
    %63 = vector.broadcast %60 : f32 to vector<1x2x128xf32>
    %64 = arith.mulf %63, %62 : vector<1x2x128xf32>
    %65 = arith.addf %59, %64 : vector<1x2x128xf32>
    %c1_25 = arith.constant 1 : index
    %c3_26 = arith.constant 3 : index
    %66 = memref.load %arg2[%c1_25, %c3_26] : memref<4x4xf32, #tpu.memory_space<smem>>
    %67 = vector.extract_strided_slice %12 {offsets = [0, 3, 0, 0], sizes = [1, 1, 2, 128], strides = [1, 1, 1, 1]} : vector<1x4x2x128xf32> to vector<1x1x2x128xf32>
    %68 = vector.shape_cast %67 : vector<1x1x2x128xf32> to vector<1x2x128xf32>
    %69 = vector.broadcast %66 : f32 to vector<1x2x128xf32>
    %70 = arith.mulf %69, %68 : vector<1x2x128xf32>
    %71 = arith.addf %65, %70 : vector<1x2x128xf32>
    %cst_27 = arith.constant 5.000000e-01 : f32
    %72 = vector.broadcast %cst_27 : f32 to vector<1x2x128xf32>
    %73 = arith.mulf %72, %71 : vector<1x2x128xf32>
    %74 = math.tanh %73 : vector<1x2x128xf32>
    %cst_28 = arith.constant 5.000000e-01 : f32
    %75 = vector.broadcast %cst_28 : f32 to vector<1x2x128xf32>
    %76 = arith.mulf %75, %74 : vector<1x2x128xf32>
    %cst_29 = arith.constant 5.000000e-01 : f32
    %77 = vector.broadcast %cst_29 : f32 to vector<1x2x128xf32>
    %78 = arith.addf %76, %77 : vector<1x2x128xf32>
    %79 = vector.extract_strided_slice %0 {offsets = [0, 1, 0, 0], sizes = [1, 1, 2, 128], strides = [1, 1, 1, 1]} : vector<1x4x2x128xf32> to vector<1x1x2x128xf32>
    %80 = vector.shape_cast %79 : vector<1x1x2x128xf32> to vector<1x2x128xf32>
    %81 = arith.mulf %80, %78 : vector<1x2x128xf32>
    %c0_30 = arith.constant 0 : index
    %c1_31 = arith.constant 1 : index
    %c0_32 = arith.constant 0 : index
    %c0_33 = arith.constant 0 : index
    %82 = vector.load %arg4[%c0_30, %c1_31, %c0_32, %c0_33] : memref<1x4x2x128xf32, #tpu.memory_space<vmem>>, vector<1x1x2x128xf32>
    %83 = vector.shape_cast %82 : vector<1x1x2x128xf32> to vector<1x2x128xf32>
    %84 = vector.shape_cast %81 : vector<1x2x128xf32> to vector<1x1x2x128xf32>
    tpu.vector_store %arg4[%c0_30, %c1_31, %c0_32, %c0_33], %84 {strides = array<i32>} : memref<1x4x2x128xf32, #tpu.memory_space<vmem>>, vector<1x1x2x128xf32>,
    %c2_34 = arith.constant 2 : index
    %c0_35 = arith.constant 0 : index
    %85 = memref.load %arg2[%c2_34, %c0_35] : memref<4x4xf32, #tpu.memory_space<smem>>
    %86 = vector.extract_strided_slice %12 {offsets = [0, 0, 0, 0], sizes = [1, 1, 2, 128], strides = [1, 1, 1, 1]} : vector<1x4x2x128xf32> to vector<1x1x2x128xf32>
    %87 = vector.shape_cast %86 : vector<1x1x2x128xf32> to vector<1x2x128xf32>
    %88 = vector.broadcast %85 : f32 to vector<1x2x128xf32>
    %89 = arith.mulf %88, %87 : vector<1x2x128xf32>
    %c2_36 = arith.constant 2 : index
    %c1_37 = arith.constant 1 : index
    %90 = memref.load %arg2[%c2_36, %c1_37] : memref<4x4xf32, #tpu.memory_space<smem>>
    %91 = vector.extract_strided_slice %12 {offsets = [0, 1, 0, 0], sizes = [1, 1, 2, 128], strides = [1, 1, 1, 1]} : vector<1x4x2x128xf32> to vector<1x1x2x128xf32>
    %92 = vector.shape_cast %91 : vector<1x1x2x128xf32> to vector<1x2x128xf32>
    %93 = vector.broadcast %90 : f32 to vector<1x2x128xf32>
    %94 = arith.mulf %93, %92 : vector<1x2x128xf32>
    %95 = arith.addf %89, %94 : vector<1x2x128xf32>
    %c2_38 = arith.constant 2 : index
    %c2_39 = arith.constant 2 : index
    %96 = memref.load %arg2[%c2_38, %c2_39] : memref<4x4xf32, #tpu.memory_space<smem>>
    %97 = vector.extract_strided_slice %12 {offsets = [0, 2, 0, 0], sizes = [1, 1, 2, 128], strides = [1, 1, 1, 1]} : vector<1x4x2x128xf32> to vector<1x1x2x128xf32>
    %98 = vector.shape_cast %97 : vector<1x1x2x128xf32> to vector<1x2x128xf32>
    %99 = vector.broadcast %96 : f32 to vector<1x2x128xf32>
    %100 = arith.mulf %99, %98 : vector<1x2x128xf32>
    %101 = arith.addf %95, %100 : vector<1x2x128xf32>
    %c2_40 = arith.constant 2 : index
    %c3_41 = arith.constant 3 : index
    %102 = memref.load %arg2[%c2_40, %c3_41] : memref<4x4xf32, #tpu.memory_space<smem>>
    %103 = vector.extract_strided_slice %12 {offsets = [0, 3, 0, 0], sizes = [1, 1, 2, 128], strides = [1, 1, 1, 1]} : vector<1x4x2x128xf32> to vector<1x1x2x128xf32>
    %104 = vector.shape_cast %103 : vector<1x1x2x128xf32> to vector<1x2x128xf32>
    %105 = vector.broadcast %102 : f32 to vector<1x2x128xf32>
    %106 = arith.mulf %105, %104 : vector<1x2x128xf32>
    %107 = arith.addf %101, %106 : vector<1x2x128xf32>
    %cst_42 = arith.constant 5.000000e-01 : f32
    %108 = vector.broadcast %cst_42 : f32 to vector<1x2x128xf32>
    %109 = arith.mulf %108, %107 : vector<1x2x128xf32>
    %110 = math.tanh %109 : vector<1x2x128xf32>
    %cst_43 = arith.constant 5.000000e-01 : f32
    %111 = vector.broadcast %cst_43 : f32 to vector<1x2x128xf32>
    %112 = arith.mulf %111, %110 : vector<1x2x128xf32>
    %cst_44 = arith.constant 5.000000e-01 : f32
    %113 = vector.broadcast %cst_44 : f32 to vector<1x2x128xf32>
    %114 = arith.addf %112, %113 : vector<1x2x128xf32>
    %115 = vector.extract_strided_slice %0 {offsets = [0, 2, 0, 0], sizes = [1, 1, 2, 128], strides = [1, 1, 1, 1]} : vector<1x4x2x128xf32> to vector<1x1x2x128xf32>
    %116 = vector.shape_cast %115 : vector<1x1x2x128xf32> to vector<1x2x128xf32>
    %117 = arith.mulf %116, %114 : vector<1x2x128xf32>
    %c0_45 = arith.constant 0 : index
    %c2_46 = arith.constant 2 : index
    %c0_47 = arith.constant 0 : index
    %c0_48 = arith.constant 0 : index
    %118 = vector.load %arg4[%c0_45, %c2_46, %c0_47, %c0_48] : memref<1x4x2x128xf32, #tpu.memory_space<vmem>>, vector<1x1x2x128xf32>
    %119 = vector.shape_cast %118 : vector<1x1x2x128xf32> to vector<1x2x128xf32>
    %120 = vector.shape_cast %117 : vector<1x2x128xf32> to vector<1x1x2x128xf32>
    tpu.vector_store %arg4[%c0_45, %c2_46, %c0_47, %c0_48], %120 {strides = array<i32>} : memref<1x4x2x128xf32, #tpu.memory_space<vmem>>, vector<1x1x2x128xf32>,
    %c3_49 = arith.constant 3 : index
    %c0_50 = arith.constant 0 : index
    %121 = memref.load %arg2[%c3_49, %c0_50] : memref<4x4xf32, #tpu.memory_space<smem>>
    %122 = vector.extract_strided_slice %12 {offsets = [0, 0, 0, 0], sizes = [1, 1, 2, 128], strides = [1, 1, 1, 1]} : vector<1x4x2x128xf32> to vector<1x1x2x128xf32>
    %123 = vector.shape_cast %122 : vector<1x1x2x128xf32> to vector<1x2x128xf32>
    %124 = vector.broadcast %121 : f32 to vector<1x2x128xf32>
    %125 = arith.mulf %124, %123 : vector<1x2x128xf32>
    %c3_51 = arith.constant 3 : index
    %c1_52 = arith.constant 1 : index
    %126 = memref.load %arg2[%c3_51, %c1_52] : memref<4x4xf32, #tpu.memory_space<smem>>
    %127 = vector.extract_strided_slice %12 {offsets = [0, 1, 0, 0], sizes = [1, 1, 2, 128], strides = [1, 1, 1, 1]} : vector<1x4x2x128xf32> to vector<1x1x2x128xf32>
    %128 = vector.shape_cast %127 : vector<1x1x2x128xf32> to vector<1x2x128xf32>
    %129 = vector.broadcast %126 : f32 to vector<1x2x128xf32>
    %130 = arith.mulf %129, %128 : vector<1x2x128xf32>
    %131 = arith.addf %125, %130 : vector<1x2x128xf32>
    %c3_53 = arith.constant 3 : index
    %c2_54 = arith.constant 2 : index
    %132 = memref.load %arg2[%c3_53, %c2_54] : memref<4x4xf32, #tpu.memory_space<smem>>
    %133 = vector.extract_strided_slice %12 {offsets = [0, 2, 0, 0], sizes = [1, 1, 2, 128], strides = [1, 1, 1, 1]} : vector<1x4x2x128xf32> to vector<1x1x2x128xf32>
    %134 = vector.shape_cast %133 : vector<1x1x2x128xf32> to vector<1x2x128xf32>
    %135 = vector.broadcast %132 : f32 to vector<1x2x128xf32>
    %136 = arith.mulf %135, %134 : vector<1x2x128xf32>
    %137 = arith.addf %131, %136 : vector<1x2x128xf32>
    %c3_55 = arith.constant 3 : index
    %c3_56 = arith.constant 3 : index
    %138 = memref.load %arg2[%c3_55, %c3_56] : memref<4x4xf32, #tpu.memory_space<smem>>
    %139 = vector.extract_strided_slice %12 {offsets = [0, 3, 0, 0], sizes = [1, 1, 2, 128], strides = [1, 1, 1, 1]} : vector<1x4x2x128xf32> to vector<1x1x2x128xf32>
    %140 = vector.shape_cast %139 : vector<1x1x2x128xf32> to vector<1x2x128xf32>
    %141 = vector.broadcast %138 : f32 to vector<1x2x128xf32>
    %142 = arith.mulf %141, %140 : vector<1x2x128xf32>
    %143 = arith.addf %137, %142 : vector<1x2x128xf32>
    %cst_57 = arith.constant 5.000000e-01 : f32
    %144 = vector.broadcast %cst_57 : f32 to vector<1x2x128xf32>
    %145 = arith.mulf %144, %143 : vector<1x2x128xf32>
    %146 = math.tanh %145 : vector<1x2x128xf32>
    %cst_58 = arith.constant 5.000000e-01 : f32
    %147 = vector.broadcast %cst_58 : f32 to vector<1x2x128xf32>
    %148 = arith.mulf %147, %146 : vector<1x2x128xf32>
    %cst_59 = arith.constant 5.000000e-01 : f32
    %149 = vector.broadcast %cst_59 : f32 to vector<1x2x128xf32>
    %150 = arith.addf %148, %149 : vector<1x2x128xf32>
    %151 = vector.extract_strided_slice %0 {offsets = [0, 3, 0, 0], sizes = [1, 1, 2, 128], strides = [1, 1, 1, 1]} : vector<1x4x2x128xf32> to vector<1x1x2x128xf32>
    %152 = vector.shape_cast %151 : vector<1x1x2x128xf32> to vector<1x2x128xf32>
    %153 = arith.mulf %152, %150 : vector<1x2x128xf32>
    %c0_60 = arith.constant 0 : index
    %c3_61 = arith.constant 3 : index
    %c0_62 = arith.constant 0 : index
    %c0_63 = arith.constant 0 : index
    %154 = vector.load %arg4[%c0_60, %c3_61, %c0_62, %c0_63] : memref<1x4x2x128xf32, #tpu.memory_space<vmem>>, vector<1x1x2x128xf32>
    %155 = vector.shape_cast %154 : vector<1x1x2x128xf32> to vector<1x2x128xf32>
    %156 = vector.shape_cast %153 : vector<1x2x128xf32> to vector<1x1x2x128xf32>
    tpu.vector_store %arg4[%c0_60, %c3_61, %c0_62, %c0_63], %156 {strides = array<i32>} : memref<1x4x2x128xf32, #tpu.memory_space<vmem>>, vector<1x1x2x128xf32>,
    return
  }
  func.func @transform_0(%arg0: i32, %arg1: i32) -> (i32, i32) {
    %c0_i32 = arith.constant 0 : i32
    %c0_i32_0 = arith.constant 0 : i32
    %c0_i32_1 = arith.constant 0 : i32
    return %c0_i32, %c0_i32_0 : i32, i32
  }
  func.func @transform_1(%arg0: i32, %arg1: i32) -> (i32, i32, i32, i32) {
    %c0_i32 = arith.constant 0 : i32
    %c0_i32_0 = arith.constant 0 : i32
    %c0_i32_1 = arith.constant 0 : i32
    return %arg0, %c0_i32, %arg1, %c0_i32_0 : i32, i32, i32, i32
  }
  func.func @transform_2(%arg0: i32, %arg1: i32) -> (i32, i32, i32, i32) {
    %c0_i32 = arith.constant 0 : i32
    %c0_i32_0 = arith.constant 0 : i32
    %c0_i32_1 = arith.constant 0 : i32
    return %arg0, %c0_i32, %arg1, %c0_i32_0 : i32, i32, i32, i32
  }
}

</mosaic_0001>

<llo_original>
// kernel: tpu_custom_call.1
$region0: #{tpu_custom_call.1}
  #allocation0 [shape = 'u32[]', space=smem, size = 0x4, offset = 0x4, fixed_abs, tag = 'smem constant byte address 0x4 - core index']
  #allocation1 [shape = 'u32[144,128]{1,0:T(1,128)}', space=vmem, size = 0x12000, scoped, tag = 'internal scratch']
  %s0 = inlined_call_operand.hbm [shape: f32[4,4], index: 0, kind: input, shape index: {}]
  %s1 = inlined_call_operand.hbm [shape: f32[2,4,2,128], index: 1, kind: input, shape index: {}]
  %s2 = inlined_call_operand.hbm [shape: f32[2,4,2,128], index: 2, kind: output, shape index: {}]
  %s3 = sld [smem:[#allocation0]]
  $region49: #{tpu_custom_call.1} parent=0
    _
  %s5 = ssub.s32 1, %s3
  %s6 = scalar_select 0, %s5, %s3
  $region1: #{tpu_custom_call.1} parent=0
    #allocation2 [shape = 'u8[2048]{0}', space=smem, size = 0x800, scoped, tag = 'input window, operand 0, single buffered']
    #allocation3 [shape = 's32[2]{0}', space=sflag, size = 0x8, scoped, tag = 'scoped memory for tpu_custom_call.1']
    #allocation4 [shape = 's32[2]{0}', space=sflag, size = 0x8, scoped, tag = 'scoped memory for tpu_custom_call.1']
    #allocation5 [shape = 's32[2]{0}', space=sflag, size = 0x8, scoped, tag = 'scoped memory for tpu_custom_call.1']
    #allocation6 [shape = 'u8[8192]{0}', space=vmem, size = 0x2000, scoped, tag = 'input window, operand 1']
    #allocation7 [shape = 'u8[8192]{0}', space=vmem, size = 0x2000, scoped, tag = 'output window, operand 0']
    %7 = vsyncpa [#allocation5], 0
    %8 = vsyncpa [#allocation3], 0
    %s9 = scalar_lea.sflag [#allocation3], 1
    %10 = vsyncpa %s9, 0
    %11 = vsyncpa [#allocation4], 0
    %s12 = scalar_lea.sflag [#allocation4], 1
    %13 = vsyncpa %s12, 0
    loop: start=0, step=1, limit=4
    $region2: #{tpu_custom_call.1} parent=1 // loop_pre_header
      _
    $region3: #{tpu_custom_call.1} parent=1 // loop_header
      %s15 = sphi 0, %s19
      %p16 = scmp.ge.s32.totalorder %s15, 4
      %s22 = sphi 0, %s34
      %s23 = sphi 0, %s30
      %s24 = sphi 0, %s22
      %s25 = sphi 0, %s23
      %s26 = sphi 0, %s24
      %s27 = sphi 0, %s25
      %s35 = sphi 0, %s35
      %s37 = sphi 0, %s35
      %s38 = sphi 0, %s37
      %s52 = sphi 0, %s38
      %s60 = sphi 0, %s62
      %s63 = sphi 0, %s60
      %s64 = sphi 0, %s63
      %s80 = sphi 0, %s64
      %s88 = sphi 0, %s90
      %s91 = sphi 0, %s88
      %s92 = sphi 0, %s91
      %s108 = sphi 0, %s92
    $region4: #{tpu_custom_call.1} parent=1 // loop_header_branch
      %18 = sbr.rel (%p16) target = $region8
    $region5: #{tpu_custom_call.1} parent=1 // loop_body
      %s20 = ssub.s32 %s15, 1
      %s21 = ssub.s32 %s15, 2
      %s28 = sadd.s32 1, %s23
      %p29 = scmp.ge.s32.totalorder %s28, 1
      %s30 = scalar_select %p29, 0, %s28
      %s31 = sadd.s32 1, %s22
      %s32 = scalar_select %p29, %s31, %s22
      %p33 = scmp.ge.s32.totalorder %s32, 2
      %s34 = scalar_select %p33, 0, %s32
      %s36 = sadd.s32 %s35, 1
      %p39 = scmp.eq.s32.totalorder %s15, 1
      %p40 = scmp.ne.s32.totalorder %s35, %s37
      %p41 = scmp.eq.s32.totalorder %s15, 0
      %p42 = por %p40, %p41
      %p43 = scmp.ne.s32.totalorder %s35, %s37
      %p44 = scmp.eq.s32.totalorder %s20, 1
      %p45 = por %p43, %p44
      %p46 = scmp.ne.s32.totalorder %s37, %s38
      %p47 = scmp.eq.s32.totalorder %s20, 0
      %p48 = por %p46, %p47
      %p49 = scmp.ne.s32.totalorder %s37, %s38
      %p50 = scmp.eq.s32.totalorder %s21, 1
      %p51 = por %p49, %p50
      %p53 = scmp.ne.s32.totalorder %s38, %s52
      %p54 = scmp.eq.s32.totalorder %s21, 0
      %p55 = por %p53, %p54
      %s56 = ssub.s32 %s22, %s34
      %s57 = ssub.s32 %s23, %s30
      %s58 = sor.u32 %s56, %s57
      %p59 = scmp.eq.s32.totalorder %s58, 0
      %s61 = sadd.s32 %s60, 1
      %s62 = scalar_select %p59, %s60, %s61
      %p65 = pneg %p59
      %p66 = scmp.eq.s32.totalorder %s15, 1
      %p67 = por %p65, %p66
      %p68 = scmp.ne.s32.totalorder %s60, %s63
      %p69 = scmp.eq.s32.totalorder %s15, 0
      %p70 = por %p68, %p69
      %p71 = scmp.ne.s32.totalorder %s60, %s63
      %p72 = scmp.eq.s32.totalorder %s20, 1
      %p73 = por %p71, %p72
      %p74 = scmp.ne.s32.totalorder %s63, %s64
      %p75 = scmp.eq.s32.totalorder %s20, 0
      %p76 = por %p74, %p75
      %p77 = scmp.ne.s32.totalorder %s63, %s64
      %p78 = scmp.eq.s32.totalorder %s21, 1
      %p79 = por %p77, %p78
      %p81 = scmp.ne.s32.totalorder %s64, %s80
      %p82 = scmp.eq.s32.totalorder %s21, 0
      %p83 = por %p81, %p82
      %s84 = ssub.s32 %s22, %s34
      %s85 = ssub.s32 %s23, %s30
      %s86 = sor.u32 %s84, %s85
      %p87 = scmp.eq.s32.totalorder %s86, 0
      %s89 = sadd.s32 %s88, 1
      %s90 = scalar_select %p87, %s88, %s89
      %p93 = pneg %p87
      %p94 = scmp.eq.s32.totalorder %s15, 1
      %p95 = por %p93, %p94
      %p96 = scmp.ne.s32.totalorder %s88, %s91
      %p97 = scmp.eq.s32.totalorder %s15, 0
      %p98 = por %p96, %p97
      %p99 = scmp.ne.s32.totalorder %s88, %s91
      %p100 = scmp.eq.s32.totalorder %s20, 1
      %p101 = por %p99, %p100
      %p102 = scmp.ne.s32.totalorder %s91, %s92
      %p103 = scmp.eq.s32.totalorder %s20, 0
      %p104 = por %p102, %p103
      %p105 = scmp.ne.s32.totalorder %s91, %s92
      %p106 = scmp.eq.s32.totalorder %s21, 1
      %p107 = por %p105, %p106
      %p109 = scmp.ne.s32.totalorder %s92, %s108
      %p110 = scmp.eq.s32.totalorder %s21, 0
      %p111 = por %p109, %p110
      %p112 = scmp.le.s32.totalorder 1, %s15
      %p113 = scmp.lt.s32.totalorder %s15, 3
      %p114 = pnand %p112, %p113
      %p115 = pneg %p114
      // Predicated region
      $region9: #{tpu_custom_call.1} parent=5 // pred_check
        _
      $region10: #{tpu_custom_call.1} parent=5 // pred_check_branch
        %117 = sbr.rel (%p114) target = $region12
      $region11: #{tpu_custom_call.1} parent=5 // pred_region
        %s118 = ssub.s32 %s15, 1
        // Predicated region
        $region13: #{tpu_custom_call.1} parent=11 // pred_check
          %p119 = pneg %p48
        $region14: #{tpu_custom_call.1} parent=11 // pred_check_branch
          %121 = sbr.rel (%p119) target = $region16
        $region15: #{tpu_custom_call.1} parent=11 // pred_region
          %s123 = ssub.s32 64, 64
          %124 = vsyncadd [#allocation5], %s123
          %127 = dma.hbm_to_smem %s0, 64, [#allocation2], [#allocation5]
        $region16: #{tpu_custom_call.1} parent=11 // pred_fallthru
          _
      $region12: #{tpu_custom_call.1} parent=5 // pred_fallthru
        _
      %p128 = scmp.lt.s32.totalorder %s15, 2
      // Predicated region
      $region17: #{tpu_custom_call.1} parent=5 // pred_check
        %p129 = pneg %p128
      $region18: #{tpu_custom_call.1} parent=5 // pred_check_branch
        %131 = sbr.rel (%p129) target = $region20
      $region19: #{tpu_custom_call.1} parent=5 // pred_region
        // Predicated region
        $region21: #{tpu_custom_call.1} parent=19 // pred_check
          %p132 = pneg %p70
        $region22: #{tpu_custom_call.1} parent=19 // pred_check_branch
          %134 = sbr.rel (%p132) target = $region24
        $region23: #{tpu_custom_call.1} parent=19 // pred_region
          %s135 = sand.u32 %s60, 1
          %s136 = scalar_lea.sflag [#allocation3], %s135
          %s137 = sand.u32 %s60, 1
          %s138 = smul.addr %s137, 8
          %s139 = scalar_lea.vmem [#allocation6], %s138
          %s141 = ssub.s32 128, 128
          %142 = vsyncadd %s136, %s141
          %s143 = smul.addr %s22, 4
          %s144 = sadd.s32 %s23, %s143
          %s145 = smul.addr %s144, 32
          %s146 = scalar_lea.hbm %s1, %s145
          %s147 = sshll.u32 %s139, 4
          %s148 = int_to_ptr.vmem [resolvable:$true] %s147
          %153 = dma.hbm_to_vmem [thread:$0]  %s146, 128, %s148, %s136, 32, 32, 2
        $region24: #{tpu_custom_call.1} parent=19 // pred_fallthru
          _
      $region20: #{tpu_custom_call.1} parent=5 // pred_fallthru
        _
      %p154 = scmp.le.s32.totalorder 1, %s15
      %p155 = scmp.lt.s32.totalorder %s15, 3
      %p156 = pnand %p154, %p155
      %p157 = pneg %p156
      // Predicated region
      $region25: #{tpu_custom_call.1} parent=5 // pred_check
        _
      $region26: #{tpu_custom_call.1} parent=5 // pred_check_branch
        %159 = sbr.rel (%p156) target = $region28
      $region27: #{tpu_custom_call.1} parent=5 // pred_region
        %s160 = ssub.s32 %s15, 1
        // Predicated region
        $region29: #{tpu_custom_call.1} parent=27 // pred_check
          %p161 = pneg %p48
        $region30: #{tpu_custom_call.1} parent=27 // pred_check_branch
          %163 = sbr.rel (%p161) target = $region32
        $region31: #{tpu_custom_call.1} parent=27 // pred_region
          %164 = dma.done [#allocation5], 64
        $region32: #{tpu_custom_call.1} parent=27 // pred_fallthru
          _
        %s165 = sand.u32 %s63, 1
        %s166 = scalar_lea.sflag [#allocation3], %s165
        %s167 = sand.u32 %s63, 1
        %s168 = smul.addr %s167, 8
        %s169 = scalar_lea.vmem [#allocation6], %s168
        // Predicated region
        $region33: #{tpu_custom_call.1} parent=27 // pred_check
          %p170 = pneg %p76
        $region34: #{tpu_custom_call.1} parent=27 // pred_check_branch
          %172 = sbr.rel (%p170) target = $region36
        $region35: #{tpu_custom_call.1} parent=27 // pred_region
          %173 = dma.done %s166, 128
        $region36: #{tpu_custom_call.1} parent=27 // pred_fallthru
          _
        %174 = sfence
        %p175 = pneg %p48
        %p176 = pneg %p45
        %s177 = sand.u32 %s63, 1
        %s178 = scalar_lea.sflag [#allocation3], %s177
        %s179 = sand.u32 %s63, 1
        %s180 = smul.addr %s179, 8
        %s181 = scalar_lea.vmem [#allocation6], %s180
        %p182 = pneg %p76
        %p183 = pneg %p73
        %p184 = pneg %p104
        %p185 = pneg %p101
        %s186 = sand.u32 %s91, 1
        %s187 = scalar_lea.sflag [#allocation4], %s186
        %s188 = sand.u32 %s91, 1
        %s189 = smul.addr %s188, 8
        %s190 = scalar_lea.vmem [#allocation7], %s189
        %v191 = vld [vmem:[%s169] sm:$0x3]
        %v192 = vld [vmem:[%s169 + $0x2] sm:$0x3]
        %v193 = vld [vmem:[%s169 + $0x4] sm:$0x3]
        %v194 = vld [vmem:[%s169 + $0x6] sm:$0x3]
        %vm195 = vcmp.gt.f32.partialorder %v191, 0.0
        %vm196 = vcmp.gt.f32.partialorder %v192, 0.0
        %vm197 = vcmp.gt.f32.partialorder %v193, 0.0
        %vm198 = vcmp.gt.f32.partialorder %v194, 0.0
        %v199 = vmin.f32 %v191, 0.0
        %v200 = vmin.f32 %v192, 0.0
        %v201 = vmin.f32 %v193, 0.0
        %v202 = vmin.f32 %v194, 0.0
        %v203 = vmul.f32 %v199, 1.442695
        %v204 = vpow.pop %v203
        %v205 = vmul.f32 %v200, 1.442695
        %v206 = vpow.pop %v205
        %v207 = vmul.f32 %v201, 1.442695
        %v208 = vpow.pop %v207
        %v209 = vmul.f32 %v202, 1.442695
        %v210 = vpow.pop %v209
        %v211 = vsub.f32 %v204, 1.0
        %v212 = vsub.f32 %v206, 1.0
        %v213 = vsub.f32 %v208, 1.0
        %v214 = vsub.f32 %v210, 1.0
        %v215 = vmul.f32 %v211, 1.6732632
        %v216 = vmul.f32 %v212, 1.6732632
        %v217 = vmul.f32 %v213, 1.6732632
        %v218 = vmul.f32 %v214, 1.6732632
        %v219 = vsel %vm195, %v191, %v215
        %v220 = vsel %vm196, %v192, %v216
        %v221 = vsel %vm197, %v193, %v217
        %v222 = vsel %vm198, %v194, %v218
        %v223 = vmul.f32 %v219, 1.050701
        %v224 = vmul.f32 %v220, 1.050701
        %v225 = vmul.f32 %v221, 1.050701
        %v226 = vmul.f32 %v222, 1.050701
        %s227 = sld [smem:[#allocation2]]
        %v228 = vstv %s227
        %v229 = vmul.f32 %v228, %v223
        %s230 = sld [smem:[#allocation2 + $0x1]]
        %v231 = vstv %s230
        %v232 = vmul.f32 %v231, %v224
        %v233 = vadd.f32 %v229, %v232
        %s234 = sld [smem:[#allocation2 + $0x2]]
        %v235 = vstv %s234
        %v236 = vmul.f32 %v235, %v225
        %v237 = vadd.f32 %v233, %v236
        %s238 = sld [smem:[#allocation2 + $0x3]]
        %v239 = vstv %s238
        %v240 = vmul.f32 %v239, %v226
        %v241 = vadd.f32 %v237, %v240
        %v242 = vmul.f32 %v241, 0.5
        %v243 = vtanh.pop %v242
        %v244 = vmul.f32 %v243, 0.5
        %v245 = vadd.f32 %v244, 0.5
        %v246 = vmul.f32 %v191, %v245
        %247 = vst [vmem:[%s190] sm:$0x3] %v246
        %s248 = sld [smem:[#allocation2 + $0x80]]
        %v249 = vstv %s248
        %v250 = vmul.f32 %v249, %v223
        %s251 = sld [smem:[#allocation2 + $0x81]]
        %v252 = vstv %s251
        %v253 = vmul.f32 %v252, %v224
        %v254 = vadd.f32 %v250, %v253
        %s255 = sld [smem:[#allocation2 + $0x82]]
        %v256 = vstv %s255
        %v257 = vmul.f32 %v256, %v225
        %v258 = vadd.f32 %v254, %v257
        %s259 = sld [smem:[#allocation2 + $0x83]]
        %v260 = vstv %s259
        %v261 = vmul.f32 %v260, %v226
        %v262 = vadd.f32 %v258, %v261
        %v263 = vmul.f32 %v262, 0.5
        %v264 = vtanh.pop %v263
        %v265 = vmul.f32 %v264, 0.5
        %v266 = vadd.f32 %v265, 0.5
        %v267 = vmul.f32 %v192, %v266
        %s268 = scalar_lea.vmem %s190, 2 [#allocation7]
        %269 = vst [vmem:[%s268] sm:$0x3] %v267
        %s270 = sld [smem:[#allocation2 + $0x100]]
        %v271 = vstv %s270
        %v272 = vmul.f32 %v271, %v223
        %s273 = sld [smem:[#allocation2 + $0x101]]
        %v274 = vstv %s273
        %v275 = vmul.f32 %v274, %v224
        %v276 = vadd.f32 %v272, %v275
        %s277 = sld [smem:[#allocation2 + $0x102]]
        %v278 = vstv %s277
        %v279 = vmul.f32 %v278, %v225
        %v280 = vadd.f32 %v276, %v279
        %s281 = sld [smem:[#allocation2 + $0x103]]
        %v282 = vstv %s281
        %v283 = vmul.f32 %v282, %v226
        %v284 = vadd.f32 %v280, %v283
        %v285 = vmul.f32 %v284, 0.5
        %v286 = vtanh.pop %v285
        %v287 = vmul.f32 %v286, 0.5
        %v288 = vadd.f32 %v287, 0.5
        %v289 = vmul.f32 %v193, %v288
        %s290 = scalar_lea.vmem %s190, 4 [#allocation7]
        %291 = vst [vmem:[%s290] sm:$0x3] %v289
        %s292 = sld [smem:[#allocation2 + $0x180]]
        %v293 = vstv %s292
        %v294 = vmul.f32 %v293, %v223
        %s295 = sld [smem:[#allocation2 + $0x181]]
        %v296 = vstv %s295
        %v297 = vmul.f32 %v296, %v224
        %v298 = vadd.f32 %v294, %v297
        %s299 = sld [smem:[#allocation2 + $0x182]]
        %v300 = vstv %s299
        %v301 = vmul.f32 %v300, %v225
        %v302 = vadd.f32 %v298, %v301
        %s303 = sld [smem:[#allocation2 + $0x183]]
        %v304 = vstv %s303
        %v305 = vmul.f32 %v304, %v226
        %v306 = vadd.f32 %v302, %v305
        %v307 = vmul.f32 %v306, 0.5
        %v308 = vtanh.pop %v307
        %v309 = vmul.f32 %v308, 0.5
        %v310 = vadd.f32 %v309, 0.5
        %v311 = vmul.f32 %v194, %v310
        %s312 = scalar_lea.vmem %s190, 6 [#allocation7]
        %313 = vst [vmem:[%s312] sm:$0x3] %v311
        %s314 = sand.u32 %s91, 1
        %s315 = scalar_lea.sflag [#allocation4], %s314
        %s316 = sand.u32 %s91, 1
        %s317 = smul.addr %s316, 8
        %s318 = scalar_lea.vmem [#allocation7], %s317
        // Predicated region
        $region37: #{tpu_custom_call.1} parent=27 // pred_check
          %p319 = pneg %p101
        $region38: #{tpu_custom_call.1} parent=27 // pred_check_branch
          %321 = sbr.rel (%p319) target = $region40
        $region39: #{tpu_custom_call.1} parent=27 // pred_region
          %s323 = ssub.s32 128, 128
          %324 = vsyncadd %s315, %s323
          %s325 = smul.addr %s24, 4
          %s326 = sadd.s32 %s25, %s325
          %s327 = smul.addr %s326, 32
          %s328 = scalar_lea.hbm %s2, %s327
          %s329 = sshll.u32 %s318, 4
          %s330 = int_to_ptr.vmem [resolvable:$true] %s329
          %335 = dma.vmem_to_hbm [thread:$0]  %s330, 128, %s328, %s315, 32, 32, 2
        $region40: #{tpu_custom_call.1} parent=27 // pred_fallthru
          _
      $region28: #{tpu_custom_call.1} parent=5 // pred_fallthru
        _
      %p336 = scmp.le.s32.totalorder 2, %s15
      // Predicated region
      $region41: #{tpu_custom_call.1} parent=5 // pred_check
        %p337 = pneg %p336
      $region42: #{tpu_custom_call.1} parent=5 // pred_check_branch
        %339 = sbr.rel (%p337) target = $region44
      $region43: #{tpu_custom_call.1} parent=5 // pred_region
        %s340 = ssub.s32 %s15, 2
        // Predicated region
        $region45: #{tpu_custom_call.1} parent=43 // pred_check
          %p341 = pneg %p107
        $region46: #{tpu_custom_call.1} parent=43 // pred_check_branch
          %343 = sbr.rel (%p341) target = $region48
        $region47: #{tpu_custom_call.1} parent=43 // pred_region
          %s344 = sand.u32 %s92, 1
          %s345 = scalar_lea.sflag [#allocation4], %s344
          %s346 = sand.u32 %s92, 1
          %s347 = smul.addr %s346, 8
          %s348 = scalar_lea.vmem [#allocation7], %s347
          %349 = dma.done %s345, 128
        $region48: #{tpu_custom_call.1} parent=43 // pred_fallthru
          _
      $region44: #{tpu_custom_call.1} parent=5 // pred_fallthru
        _
    $region6: #{tpu_custom_call.1} parent=1 // loop_footer
      %s19 = sadd.s32 1, %s15
    $region7: #{tpu_custom_call.1} parent=1 // loop_footer_branch
      %14 = sbr.rel target = $region3
    $region8: #{tpu_custom_call.1} parent=1 // loop_exit
      _
    %350 = vsyncpa [#allocation3], 1
    %s351 = scalar_lea.sflag [#allocation3], 1
    %352 = vsyncpa %s351, 1
    %353 = vsyncpa [#allocation4], 1
    %s354 = scalar_lea.sflag [#allocation4], 1
    %355 = vsyncpa %s354, 1
    %356 = vsyncpa [#allocation5], 1
    %s357 = scalar_lea.sflag [#allocation5], 1
    %358 = vsyncpa %s357, 1

</llo_original>
